<compile_context>
chip_gen: v6e
topology: v6e:2x2x1
jax: 0.10.0
libtpu: 0.0.40
codegen_flags: <defaults>
</compile_context>

<pallas_src>
import functools

import jax
import jax.numpy as jnp
from jax import lax
from jax.experimental import pallas as pl
from jax.experimental.pallas import tpu as pltpu


_NEG = -1e30          # finite "-inf" used to pad the class dimension
_IGNORE_INDEX = -100  # PyTorch nn.CrossEntropyLoss default


def _round_up(x: int, m: int) -> int:
    return (x + m - 1) // m * m


def _ce_kernel(x_ref, t_ref, sum_ref, cnt_ref, m_sc, l_sc, tgt_sc, *, num_classes):
    ci = pl.program_id(1)
    num_ci = pl.num_programs(1)

    @pl.when(ci == 0)
    def _init():
        m_sc[...] = jnp.full_like(m_sc, -jnp.inf)
        l_sc[...] = jnp.zeros_like(l_sc)
        tgt_sc[...] = jnp.zeros_like(tgt_sc)

    x = x_ref[...].astype(jnp.float32)    # (tile_n, tile_c), f32 math on-chip
    t = t_ref[...]                        # (tile_n, 1) int32
    tn, tc = x.shape

    # Global column (class) index of every element in this class-tile.
    col = ci * tc + lax.broadcasted_iota(jnp.int32, (tn, tc), 1)

    # ---- online log-sum-exp, fused with the target-logit gather (one pass) ----
    m_prev = m_sc[...]
    m_new = jnp.maximum(m_prev, jnp.max(x, axis=-1, keepdims=True))
    alpha = jnp.exp(m_prev - m_new)
    p = jnp.exp(x - m_new)
    l_sc[...] = alpha * l_sc[...] + jnp.sum(p, axis=-1, keepdims=True)
    m_sc[...] = m_new
    tgt_sc[...] += jnp.sum(jnp.where(col == t, x, 0.0), axis=-1, keepdims=True)

    # ---- finalize once per row tile (last class tile): partial sum + count ----
    @pl.when(ci == num_ci - 1)
    def _finalize():
        lse = m_sc[...] + jnp.log(l_sc[...])                 # (tile_n, 1)
        valid = jnp.logical_and(t >= 0, t < num_classes)     # ignore_index / padding
        per_row = jnp.where(valid, lse - tgt_sc[...], 0.0)   # -log p[target]
        loss_sum = jnp.sum(per_row)
        count = jnp.sum(valid.astype(jnp.float32))
        # Lane-dense (8,128) broadcast stores -> unmasked vst; reduced in wrapper.
        sum_ref[...] = jnp.broadcast_to(loss_sum, sum_ref.shape).astype(jnp.float32)
        cnt_ref[...] = jnp.broadcast_to(count, cnt_ref.shape).astype(jnp.float32)


def loss_ce(logits: jax.Array, target: jax.Array,
            *, max_tile_n: int = 512, max_tile_c: int = 2048) -> jax.Array:
    """Mean cross-entropy (ignore_index=-100). logits: (N, C) f32/bf16, target: (N,) int."""
    n, c = logits.shape
    target = target.astype(jnp.int32)

    # Tile selection: sized so 2 pipeline buffers of the logits tile stay well
    # under the smallest default scoped VMEM across v5e/v6e/v7x.
    tile_n = max_tile_n if n >= max_tile_n else _round_up(max(n, 1), 8)
    c128 = _round_up(max(c, 1), 128)
    tile_c = max_tile_c if c128 >= max_tile_c else c128
    n_pad = _round_up(n, tile_n)
    c_pad = _round_up(c, tile_c)

    # Pad tails: logit columns with a huge negative (no LSE contribution),
    # target rows with ignore_index (excluded from sum and count).
    if (n_pad, c_pad) != (n, c):
        logits = jnp.pad(
            logits, ((0, n_pad - n), (0, c_pad - c)),
            constant_values=jnp.asarray(_NEG, logits.dtype))
    if n_pad != n:
        target = jnp.pad(target, (0, n_pad - n), constant_values=_IGNORE_INDEX)
    target2d = target.reshape(n_pad, 1)

    g_rows = n_pad // tile_n
    g_cols = c_pad // tile_c

    kernel = functools.partial(_ce_kernel, num_classes=c)

    sums, counts = pl.pallas_call(
        kernel,
        out_shape=(
            jax.ShapeDtypeStruct((g_rows, 8, 128), jnp.float32),
            jax.ShapeDtypeStruct((g_rows, 8, 128), jnp.float32),
        ),
        grid_spec=pltpu.PrefetchScalarGridSpec(
            num_scalar_prefetch=0,
            grid=(g_rows, g_cols),
            in_specs=[
                pl.BlockSpec((tile_n, tile_c), lambda ri, ci: (ri, ci)),
                pl.BlockSpec((tile_n, 1), lambda ri, ci: (ri, 0)),
            ],
            out_specs=(
                pl.BlockSpec((1, 8, 128), lambda ri, ci: (ri, 0, 0)),
                pl.BlockSpec((1, 8, 128), lambda ri, ci: (ri, 0, 0)),
            ),
            scratch_shapes=[
                pltpu.VMEM((tile_n, 1), jnp.float32),  # running max m
                pltpu.VMEM((tile_n, 1), jnp.float32),  # running sum l
                pltpu.VMEM((tile_n, 1), jnp.float32),  # target logit accumulator
            ],
        ),
        compiler_params=pltpu.CompilerParams(
            dimension_semantics=("parallel", "arbitrary"),
        ),
    )(logits, target2d)

    total = jnp.sum(sums[:, 0, 0])
    count = jnp.sum(counts[:, 0, 0])
    return total / count


def _ref_loss(logits, target, ignore_index=_IGNORE_INDEX):
    """Pure-JAX reference identical to torch CrossEntropyLoss(reduction='mean')."""
    logits = logits.astype(jnp.float32)
    logp = jax.nn.log_softmax(logits, axis=-1)
    n = logits.shape[0]
    valid = target != ignore_index
    picked = logp[jnp.arange(n), jnp.where(valid, target, 0)]
    return -(jnp.sum(jnp.where(valid, picked, 0.0)) / jnp.sum(valid))


if __name__ == "__main__":
    key = jax.random.PRNGKey(0)
    k1, k2, k3, k4 = jax.random.split(key, 4)

    # Small check: exercises row/column tail padding + masking (grid = (1, 1)).
    n1, c1 = 10, 37
    logits1 = jax.random.normal(k1, (n1, c1), dtype=jnp.float32)
    target1 = jax.random.randint(k2, (n1,), 0, c1, dtype=jnp.int32)
    out1 = loss_ce(logits1, target1)
    jax.block_until_ready(out1)
    ref1 = _ref_loss(logits1, target1)
    assert jnp.allclose(out1, ref1, atol=1e-5, rtol=1e-5), (out1, ref1)

    # Moderate check: multiple tiles on both grid axes + an ignore_index target.
    n2, c2 = 1100, 4500
    logits2 = jax.random.normal(k3, (n2, c2), dtype=jnp.float32)
    target2 = jax.random.randint(k4, (n2,), 0, c2, dtype=jnp.int32)
    target2 = target2.at[7].set(_IGNORE_INDEX)
    out2 = loss_ce(logits2, target2)
    jax.block_until_ready(out2)
    ref2 = _ref_loss(logits2, target2)
    assert jnp.allclose(out2, ref2, atol=1e-4, rtol=1e-4), (out2, ref2)

    print("KERNEL_OK")
</pallas_src>

<mosaic_0001>
module attributes {stable_mosaic.version = 11 : i64} {
  func.func @_ce_kernel(%arg0: i32, %arg1: i32, %arg2: memref<16x128xf32, #tpu.memory_space<vmem>>, %arg3: memref<16x1xi32, #tpu.memory_space<vmem>>, %arg4: memref<1x8x128xf32, #tpu.memory_space<vmem>>, %arg5: memref<1x8x128xf32, #tpu.memory_space<vmem>>, %arg6: memref<16x1xf32, #tpu.memory_space<vmem>>, %arg7: memref<16x1xf32, #tpu.memory_space<vmem>>, %arg8: memref<16x1xf32, #tpu.memory_space<vmem>>) attributes {dimension_semantics = [#tpu.dimension_semantics<parallel>, #tpu.dimension_semantics<arbitrary>], iteration_bounds = array<i64: 1, 1>, scalar_prefetch = 0 : i64, scratch_operands = 3 : i64, tpu.core_type = #tpu.core_type<tc>, window_params = [{transform_indices = @transform_0, window_bounds = array<i64: 16, 128>}, {transform_indices = @transform_1, window_bounds = array<i64: 16, 1>}, {transform_indices = @transform_2, window_bounds = array<i64: 1, 8, 128>}, {transform_indices = @transform_3, window_bounds = array<i64: 1, 8, 128>}]} {
    %c0_i32 = arith.constant 0 : i32
    %0 = arith.cmpi eq, %arg1, %c0_i32 : i32
    %1 = arith.extui %0 : i1 to i32
    %c0_i32_0 = arith.constant 0 : i32
    %2 = arith.cmpi ne, %1, %c0_i32_0 : i32
    scf.if %2 {
      %cst_21 = arith.constant 0xFF800000 : f32
      %37 = vector.broadcast %cst_21 : f32 to vector<16x1xf32>
      %c0_22 = arith.constant 0 : index
      %c0_23 = arith.constant 0 : index
      %38 = vector.load %arg6[%c0_22, %c0_23] : memref<16x1xf32, #tpu.memory_space<vmem>>, vector<16x1xf32>
      tpu.vector_store %arg6[%c0_22, %c0_23], %37 {strides = array<i32>} : memref<16x1xf32, #tpu.memory_space<vmem>>, vector<16x1xf32>,
      %cst_24 = arith.constant 0.000000e+00 : f32
      %39 = vector.broadcast %cst_24 : f32 to vector<16x1xf32>
      %c0_25 = arith.constant 0 : index
      %c0_26 = arith.constant 0 : index
      %40 = vector.load %arg7[%c0_25, %c0_26] : memref<16x1xf32, #tpu.memory_space<vmem>>, vector<16x1xf32>
      tpu.vector_store %arg7[%c0_25, %c0_26], %39 {strides = array<i32>} : memref<16x1xf32, #tpu.memory_space<vmem>>, vector<16x1xf32>,
      %cst_27 = arith.constant 0.000000e+00 : f32
      %41 = vector.broadcast %cst_27 : f32 to vector<16x1xf32>
      %c0_28 = arith.constant 0 : index
      %c0_29 = arith.constant 0 : index
      %42 = vector.load %arg8[%c0_28, %c0_29] : memref<16x1xf32, #tpu.memory_space<vmem>>, vector<16x1xf32>
      tpu.vector_store %arg8[%c0_28, %c0_29], %41 {strides = array<i32>} : memref<16x1xf32, #tpu.memory_space<vmem>>, vector<16x1xf32>,
    } else {
    }
    %c0 = arith.constant 0 : index
    %c0_1 = arith.constant 0 : index
    %3 = vector.load %arg2[%c0, %c0_1] : memref<16x128xf32, #tpu.memory_space<vmem>>, vector<16x128xf32>
    %c0_2 = arith.constant 0 : index
    %c0_3 = arith.constant 0 : index
    %4 = vector.load %arg3[%c0_2, %c0_3] : memref<16x1xi32, #tpu.memory_space<vmem>>, vector<16x1xi32>
    %c128_i32 = arith.constant 128 : i32
    %5 = arith.muli %arg1, %c128_i32 : i32
    %6 = tpu.iota {dimensions = array<i32: 1>} : vector<16x128xi32>
    %7 = vector.broadcast %5 : i32 to vector<16x128xi32>
    %8 = arith.addi %7, %6 : vector<16x128xi32>
    %c0_4 = arith.constant 0 : index
    %c0_5 = arith.constant 0 : index
    %9 = vector.load %arg6[%c0_4, %c0_5] : memref<16x1xf32, #tpu.memory_space<vmem>>, vector<16x1xf32>
    %cst = arith.constant dense<0xFF800000> : vector<16xf32>
    %10 = vector.multi_reduction <maximumf>, %3, %cst [1] : vector<16x128xf32> to vector<16xf32>
    %11 = vector.shape_cast %10 : vector<16xf32> to vector<16x1xf32>
    %12 = arith.maximumf %9, %11 : vector<16x1xf32>
    %13 = arith.subf %9, %12 : vector<16x1xf32>
    %14 = math.exp %13 : vector<16x1xf32>
    %15 = vector.broadcast %12 : vector<16x1xf32> to vector<16x128xf32>
    %16 = arith.subf %3, %15 : vector<16x128xf32>
    %17 = math.exp %16 : vector<16x128xf32>
    %c0_6 = arith.constant 0 : index
    %c0_7 = arith.constant 0 : index
    %18 = vector.load %arg7[%c0_6, %c0_7] : memref<16x1xf32, #tpu.memory_space<vmem>>, vector<16x1xf32>
    %19 = arith.mulf %14, %18 : vector<16x1xf32>
    %cst_8 = arith.constant dense<0.000000e+00> : vector<16xf32>
    %20 = vector.multi_reduction <add>, %17, %cst_8 [1] : vector<16x128xf32> to vector<16xf32>
    %21 = vector.shape_cast %20 : vector<16xf32> to vector<16x1xf32>
    %22 = arith.addf %19, %21 : vector<16x1xf32>
    %c0_9 = arith.constant 0 : index
    %c0_10 = arith.constant 0 : index
    %23 = vector.load %arg7[%c0_9, %c0_10] : memref<16x1xf32, #tpu.memory_space<vmem>>, vector<16x1xf32>
    tpu.vector_store %arg7[%c0_9, %c0_10], %22 {strides = array<i32>} : memref<16x1xf32, #tpu.memory_space<vmem>>, vector<16x1xf32>,
    %c0_11 = arith.constant 0 : index
    %c0_12 = arith.constant 0 : index
    %24 = vector.load %arg6[%c0_11, %c0_12] : memref<16x1xf32, #tpu.memory_space<vmem>>, vector<16x1xf32>
    tpu.vector_store %arg6[%c0_11, %c0_12], %12 {strides = array<i32>} : memref<16x1xf32, #tpu.memory_space<vmem>>, vector<16x1xf32>,
    %c0_13 = arith.constant 0 : index
    %c0_14 = arith.constant 0 : index
    %25 = vector.load %arg8[%c0_13, %c0_14] : memref<16x1xf32, #tpu.memory_space<vmem>>, vector<16x1xf32>
    %26 = vector.broadcast %4 : vector<16x1xi32> to vector<16x128xi32>
    %27 = arith.cmpi eq, %8, %26 : vector<16x128xi32>
    %cst_15 = arith.constant 0.000000e+00 : f32
    %28 = vector.broadcast %cst_15 : f32 to vector<16x128xf32>
    %29 = arith.select %27, %3, %28 : vector<16x128xi1>, vector<16x128xf32>
    %cst_16 = arith.constant dense<0.000000e+00> : vector<16xf32>
    %30 = vector.multi_reduction <add>, %29, %cst_16 [1] : vector<16x128xf32> to vector<16xf32>
    %31 = vector.shape_cast %30 : vector<16xf32> to vector<16x1xf32>
    %32 = arith.addf %25, %31 : vector<16x1xf32>
    %c0_17 = arith.constant 0 : index
    %c0_18 = arith.constant 0 : index
    %33 = vector.load %arg8[%c0_17, %c0_18] : memref<16x1xf32, #tpu.memory_space<vmem>>, vector<16x1xf32>
    tpu.vector_store %arg8[%c0_17, %c0_18], %32 {strides = array<i32>} : memref<16x1xf32, #tpu.memory_space<vmem>>, vector<16x1xf32>,
    %c0_i32_19 = arith.constant 0 : i32
    %34 = arith.cmpi eq, %arg1, %c0_i32_19 : i32
    %35 = arith.extui %34 : i1 to i32
    %c0_i32_20 = arith.constant 0 : i32
    %36 = arith.cmpi ne, %35, %c0_i32_20 : i32
    scf.if %36 {
      %c0_21 = arith.constant 0 : index
      %c0_22 = arith.constant 0 : index
      %37 = vector.load %arg6[%c0_21, %c0_22] : memref<16x1xf32, #tpu.memory_space<vmem>>, vector<16x1xf32>
      %c0_23 = arith.constant 0 : index
      %c0_24 = arith.constant 0 : index
      %38 = vector.load %arg7[%c0_23, %c0_24] : memref<16x1xf32, #tpu.memory_space<vmem>>, vector<16x1xf32>
      %39 = math.log %38 : vector<16x1xf32>
      %40 = arith.addf %37, %39 : vector<16x1xf32>
      %c0_i32_25 = arith.constant 0 : i32
      %41 = vector.broadcast %c0_i32_25 : i32 to vector<16x1xi32>
      %42 = arith.cmpi sge, %4, %41 : vector<16x1xi32>
      %c37_i32 = arith.constant 37 : i32
      %43 = vector.broadcast %c37_i32 : i32 to vector<16x1xi32>
      %44 = arith.cmpi slt, %4, %43 : vector<16x1xi32>
      %45 = arith.andi %42, %44 : vector<16x1xi1>
      %c0_26 = arith.constant 0 : index
      %c0_27 = arith.constant 0 : index
      %46 = vector.load %arg8[%c0_26, %c0_27] : memref<16x1xf32, #tpu.memory_space<vmem>>, vector<16x1xf32>
      %47 = arith.subf %40, %46 : vector<16x1xf32>
      %cst_28 = arith.constant 0.000000e+00 : f32
      %48 = vector.broadcast %cst_28 : f32 to vector<16x1xf32>
      %49 = arith.select %45, %47, %48 : vector<16x1xi1>, vector<16x1xf32>
      %50 = vector.shape_cast %49 : vector<16x1xf32> to vector<1x16x1xf32>
      %cst_29 = arith.constant dense<0.000000e+00> : vector<1xf32>
      %51 = vector.multi_reduction <add>, %50, %cst_29 [1, 2] : vector<1x16x1xf32> to vector<1xf32>
      %52 = vector.shape_cast %51 : vector<1xf32> to vector<1x1x1xf32>
      %53 = vector.extract %52[0, 0, 0] : f32 from vector<1x1x1xf32>
      %54 = arith.extui %45 : vector<16x1xi1> to vector<16x1xi32>
      %55 = arith.sitofp %54 : vector<16x1xi32> to vector<16x1xf32>
      %56 = vector.shape_cast %55 : vector<16x1xf32> to vector<1x16x1xf32>
      %cst_30 = arith.constant dense<0.000000e+00> : vector<1xf32>
      %57 = vector.multi_reduction <add>, %56, %cst_30 [1, 2] : vector<1x16x1xf32> to vector<1xf32>
      %58 = vector.shape_cast %57 : vector<1xf32> to vector<1x1x1xf32>
      %59 = vector.extract %58[0, 0, 0] : f32 from vector<1x1x1xf32>
      %60 = vector.broadcast %53 : f32 to vector<1x8x128xf32>
      %c0_31 = arith.constant 0 : index
      %c0_32 = arith.constant 0 : index
      %c0_33 = arith.constant 0 : index
      %61 = vector.load %arg4[%c0_31, %c0_32, %c0_33] : memref<1x8x128xf32, #tpu.memory_space<vmem>>, vector<1x8x128xf32>
      tpu.vector_store %arg4[%c0_31, %c0_32, %c0_33], %60 {strides = array<i32>} : memref<1x8x128xf32, #tpu.memory_space<vmem>>, vector<1x8x128xf32>,
      %62 = vector.broadcast %59 : f32 to vector<1x8x128xf32>
      %c0_34 = arith.constant 0 : index
      %c0_35 = arith.constant 0 : index
      %c0_36 = arith.constant 0 : index
      %63 = vector.load %arg5[%c0_34, %c0_35, %c0_36] : memref<1x8x128xf32, #tpu.memory_space<vmem>>, vector<1x8x128xf32>
      tpu.vector_store %arg5[%c0_34, %c0_35, %c0_36], %62 {strides = array<i32>} : memref<1x8x128xf32, #tpu.memory_space<vmem>>, vector<1x8x128xf32>,
    } else {
    }
    return
  }
  func.func @transform_0(%arg0: i32, %arg1: i32) -> (i32, i32) {
    %c0_i32 = arith.constant 0 : i32
    return %arg0, %arg1 : i32, i32
  }
  func.func @transform_1(%arg0: i32, %arg1: i32) -> (i32, i32) {
    %c0_i32 = arith.constant 0 : i32
    %c0_i32_0 = arith.constant 0 : i32
    return %arg0, %c0_i32 : i32, i32
  }
  func.func @transform_2(%arg0: i32, %arg1: i32) -> (i32, i32, i32) {
    %c0_i32 = arith.constant 0 : i32
    %c0_i32_0 = arith.constant 0 : i32
    %c0_i32_1 = arith.constant 0 : i32
    return %arg0, %c0_i32, %c0_i32_0 : i32, i32, i32
  }
  func.func @transform_3(%arg0: i32, %arg1: i32) -> (i32, i32, i32) {
    %c0_i32 = arith.constant 0 : i32
    %c0_i32_0 = arith.constant 0 : i32
    %c0_i32_1 = arith.constant 0 : i32
    return %arg0, %c0_i32, %c0_i32_0 : i32, i32, i32
  }
}

</mosaic_0001>

<llo_original>
// kernel: tpu_custom_call.1
$region0: #{tpu_custom_call.1}
  #allocation0 [shape = 'u32[]', space=smem, size = 0x4, offset = 0x4, fixed_abs, tag = 'smem constant byte address 0x4 - core index']
  #allocation1 [shape = 'u32[144,128]{1,0:T(1,128)}', space=vmem, size = 0x12000, scoped, tag = 'internal scratch']
  #allocation2 [shape = 'f32[16,1]{1,0:T(8,128)}', space=vmem, size = 0x2000, scoped, tag = 'scratch operand']
  #allocation3 [shape = 'f32[16,1]{1,0:T(8,128)}', space=vmem, size = 0x2000, scoped, tag = 'scratch operand']
  #allocation4 [shape = 'f32[16,1]{1,0:T(8,128)}', space=vmem, size = 0x2000, scoped, tag = 'scratch operand']
  %s0 = inlined_call_operand.vmem [shape: f32[16,128], index: 0, kind: input, shape index: {}]
  %s1 = inlined_call_operand.vmem [shape: s32[16,1], index: 1, kind: input, shape index: {}]
  %s2 = inlined_call_operand.hbm [shape: f32[1,8,128], index: 2, kind: output, shape index: {0}]
  %s3 = inlined_call_operand.hbm [shape: f32[1,8,128], index: 3, kind: output, shape index: {1}]
  %4 = xla_tuple %s2, %s3
  %s5 = sld [smem:[#allocation0]]
  $region34: #{tpu_custom_call.1} parent=0
    _
  %s7 = ssub.s32 1, %s5
  %s8 = scalar_select 0, %s7, %s5
  $region1: #{tpu_custom_call.1} parent=0
    #allocation5 [shape = 'u8[4096]{0}', space=vmem, size = 0x1000, scoped, tag = 'output window, operand 0, single buffered']
    #allocation6 [shape = 's32[1]{0}', space=sflag, size = 0x4, scoped, tag = 'scoped memory for tpu_custom_call.1']
    #allocation7 [shape = 'u8[4096]{0}', space=vmem, size = 0x1000, scoped, tag = 'output window, operand 1, single buffered']
    #allocation8 [shape = 's32[1]{0}', space=sflag, size = 0x4, scoped, tag = 'scoped memory for tpu_custom_call.1']
    %9 = vsyncpa [#allocation6], 0
    %10 = vsyncpa [#allocation8], 0
    // Predicated region
    $region2: #{tpu_custom_call.1} parent=1 // pred_check
      _
    $region3: #{tpu_custom_call.1} parent=1 // pred_check_branch
      %12 = sbr.rel (0) target = $region5
    $region4: #{tpu_custom_call.1} parent=1 // pred_region
      _
    $region5: #{tpu_custom_call.1} parent=1 // pred_fallthru
      _
    // Predicated region
    $region6: #{tpu_custom_call.1} parent=1 // pred_check
      _
    $region7: #{tpu_custom_call.1} parent=1 // pred_check_branch
      %14 = sbr.rel (0) target = $region9
    $region8: #{tpu_custom_call.1} parent=1 // pred_region
      _
    $region9: #{tpu_custom_call.1} parent=1 // pred_fallthru
      _
    %p15 = scmp.eq.s32.totalorder 0, 0
    // Predicated region
    $region10: #{tpu_custom_call.1} parent=1 // pred_check
      %p16 = pneg %p15
    $region11: #{tpu_custom_call.1} parent=1 // pred_check_branch
      %18 = sbr.rel (%p16) target = $region13
    $region12: #{tpu_custom_call.1} parent=1 // pred_region
      %vm19 = vcmask 7168
      %20 = vst.msk [vmem:[#allocation2] sm:$0xff] %vm19, -inf
      %21 = vst.msk [vmem:[#allocation2 + $0x8] sm:$0xff] %vm19, -inf
      %22 = vst.msk [vmem:[#allocation3] sm:$0xff] %vm19, 0.0
      %23 = vst.msk [vmem:[#allocation3 + $0x8] sm:$0xff] %vm19, 0.0
      %24 = vst.msk [vmem:[#allocation4] sm:$0xff] %vm19, 0.0
      %25 = vst.msk [vmem:[#allocation4 + $0x8] sm:$0xff] %vm19, 0.0
    $region13: #{tpu_custom_call.1} parent=1 // pred_fallthru
      _
    %v26 = vld [vmem:[%s0] sm:$0xff]
    %v27 = vld [vmem:[%s0 + $0x8] sm:$0xff]
    %v28 = vld [vmem:[%s1] sm:$0xff]
    %v29 = vld [vmem:[%s1 + $0x8] sm:$0xff]
    %s30 = smul.u32 0, 128
    %v31 = vlaneseq
    %v32 = vand.u32 %v31, 127
    %v33 = vstv %s30
    %v34 = vadd.s32 %v33, %v32
    %v35 = vld [vmem:[#allocation2] sm:$0xff]
    %v36 = vld [vmem:[#allocation2 + $0x8] sm:$0xff]
    %37 = vmax.xlane.f32.xlu0 %v26
    %v38 = vpop.xlane.xlu0 %37
    %39 = vmax.xlane.f32.xlu0 %v27
    %v40 = vpop.xlane.xlu0 %39
    %v41 = vmax.f32 %v35, %v38
    %v42 = vmax.f32 %v36, %v40
    %v43 = vsub.f32 %v35, %v41
    %v44 = vsub.f32 %v36, %v42
    %v45 = vmul.f32 %v43, 1.442695
    %v46 = vpow.pop %v45
    %v47 = vmul.f32 %v44, 1.442695
    %v48 = vpow.pop %v47
    %50 = vset.pattern.permute.xlu0 0
    %51 = vperm.xlu0 %50, %v41
    %v52 = vpop.permute.xlu0 %51
    %55 = vset.pattern.permute.xlu0 0
    %56 = vperm.xlu0 %55, %v42
    %v57 = vpop.permute.xlu0 %56
    %v59 = vsub.f32 %v26, %v52
    %v60 = vsub.f32 %v27, %v57
    %v61 = vmul.f32 %v59, 1.442695
    %v62 = vpow.pop %v61
    %v63 = vmul.f32 %v60, 1.442695
    %v64 = vpow.pop %v63
    %v65 = vld [vmem:[#allocation3] sm:$0xff]
    %v66 = vld [vmem:[#allocation3 + $0x8] sm:$0xff]
    %v67 = vmul.f32 %v46, %v65
    %v68 = vmul.f32 %v48, %v66
    %69 = vadd.xlane.f32.xlu0 %v62
    %v70 = vpop.xlane.xlu0 %69
    %71 = vadd.xlane.f32.xlu0 %v64
    %v72 = vpop.xlane.xlu0 %71
    %v73 = vadd.f32 %v67, %v70
    %v74 = vadd.f32 %v68, %v72
    %vm75 = vcmask 7168
    %76 = vst.msk [vmem:[#allocation3] sm:$0xff] %vm75, %v73
    %77 = vst.msk [vmem:[#allocation3 + $0x8] sm:$0xff] %vm75, %v74
    %78 = vst.msk [vmem:[#allocation2] sm:$0xff] %vm75, %v41
    %79 = vst.msk [vmem:[#allocation2 + $0x8] sm:$0xff] %vm75, %v42
    %v80 = vld [vmem:[#allocation4] sm:$0xff]
    %v81 = vld [vmem:[#allocation4 + $0x8] sm:$0xff]
    %82 = vset.pattern.permute.xlu0 0
    %83 = vperm.xlu0 %82, %v28
    %v84 = vpop.permute.xlu0 %83
    %85 = vset.pattern.permute.xlu0 0
    %86 = vperm.xlu0 %85, %v29
    %v87 = vpop.permute.xlu0 %86
    %vm88 = vcmp.eq.s32.totalorder %v34, %v84
    %vm89 = vcmp.eq.s32.totalorder %v34, %v87
    %v90 = vsel %vm88, %v26, 0.0
    %v91 = vsel %vm89, %v27, 0.0
    %92 = vadd.xlane.f32.xlu0 %v90
    %v93 = vpop.xlane.xlu0 %92
    %94 = vadd.xlane.f32.xlu0 %v91
    %v95 = vpop.xlane.xlu0 %94
    %v96 = vadd.f32 %v80, %v93
    %v97 = vadd.f32 %v81, %v95
    %98 = vst.msk [vmem:[#allocation4] sm:$0xff] %vm75, %v96
    %99 = vst.msk [vmem:[#allocation4 + $0x8] sm:$0xff] %vm75, %v97
    // Predicated region
    $region14: #{tpu_custom_call.1} parent=1 // pred_check
      %p100 = pneg %p15
    $region15: #{tpu_custom_call.1} parent=1 // pred_check_branch
      %102 = sbr.rel (%p100) target = $region17
    $region16: #{tpu_custom_call.1} parent=1 // pred_region
      %v103 = vld [vmem:[#allocation2] sm:$0xff]
      %v104 = vld [vmem:[#allocation2 + $0x8] sm:$0xff]
      %v105 = vld [vmem:[#allocation3] sm:$0xff]
      %v106 = vld [vmem:[#allocation3 + $0x8] sm:$0xff]
      %v107 = vlog2.pop %v105
      %v108 = vmul.f32 %v107, 0.6931472
      %v109 = vlog2.pop %v106
      %v110 = vmul.f32 %v109, 0.6931472
      %v111 = vadd.f32 %v103, %v108
      %v112 = vadd.f32 %v104, %v110
      %vm113 = vcmp.ge.s32.totalorder %v28, 0
      %vm114 = vcmp.ge.s32.totalorder %v29, 0
      %vm115 = vcmp.lt.s32.totalorder %v28, 37
      %vm116 = vcmp.lt.s32.totalorder %v29, 37
      %vm117 = vmand %vm113, %vm115
      %vm118 = vmand %vm114, %vm116
      %v119 = vld [vmem:[#allocation4] sm:$0xff]
      %v120 = vld [vmem:[#allocation4 + $0x8] sm:$0xff]
      %v121 = vsub.f32 %v111, %v119
      %v122 = vsub.f32 %v112, %v120
      %v123 = vsel %vm117, %v121, 0.0
      %v124 = vsel %vm118, %v122, 0.0
      %v125 = vsel %vm75, %v123, 0.0
      %v126 = vsel %vm75, %v124, 0.0
      %v127 = vadd.f32 %v125, %v126
      %128 = vadd.xlane.f32.xlu0 %v127
      %v129 = vpop.xlane.xlu0 %128
      %v130 = vrot.slane %v129, 4
      %v131 = vadd.f32 %v129, %v130
      %v132 = vrot.slane %v131, 2
      %v133 = vadd.f32 %v131, %v132
      %v134 = vrot.slane %v133, 1
      %v135 = vadd.f32 %v133, %v134
      %s136 = vtos %v135
      %v137 = vsel %vm117, 1, 0
      %v138 = vsel %vm118, 1, 0
      %v139 = vcvt.s32.f32 %v137
      %v140 = vcvt.s32.f32 %v138
      %v141 = vsel %vm75, %v139, 0.0
      %v142 = vsel %vm75, %v140, 0.0
      %v143 = vadd.f32 %v141, %v142
      %144 = vadd.xlane.f32.xlu0 %v143
      %v145 = vpop.xlane.xlu0 %144
      %v146 = vrot.slane %v145, 4
      %v147 = vadd.f32 %v145, %v146
      %v148 = vrot.slane %v147, 2
      %v149 = vadd.f32 %v147, %v148
      %v150 = vrot.slane %v149, 1
      %v151 = vadd.f32 %v149, %v150
      %s152 = vtos %v151
      %v153 = vstv %s136
      %154 = vst [vmem:[#allocation5] sm:$0xff] %v153
      %v155 = vstv %s152
      %156 = vst [vmem:[#allocation7] sm:$0xff] %v155
    $region17: #{tpu_custom_call.1} parent=1 // pred_fallthru
      _
    // Predicated region
    $region18: #{tpu_custom_call.1} parent=1 // pred_check
      _
    $region19: #{tpu_custom_call.1} parent=1 // pred_check_branch
      %158 = sbr.rel (0) target = $region21
    $region20: #{tpu_custom_call.1} parent=1 // pred_region
      %s160 = ssub.s32 128, 128
      %161 = vsyncadd [#allocation6], %s160
      %s163 = sshll.u32 [#allocation5], 4
      %s164 = int_to_ptr.vmem [resolvable:$true] %s163
      %166 = dma.vmem_to_hbm [thread:$0]  %s164, 128, %s2, [#allocation6]
    $region21: #{tpu_custom_call.1} parent=1 // pred_fallthru
      _
    // Predicated region
    $region22: #{tpu_custom_call.1} parent=1 // pred_check
      _
    $region23: #{tpu_custom_call.1} parent=1 // pred_check_branch
      %168 = sbr.rel (0) target = $region25
    $region24: #{tpu_custom_call.1} parent=1 // pred_region
      %s170 = ssub.s32 128, 128
      %171 = vsyncadd [#allocation8], %s170
      %s173 = sshll.u32 [#allocation7], 4
      %s174 = int_to_ptr.vmem [resolvable:$true] %s173
      %176 = dma.vmem_to_hbm [thread:$0]  %s174, 128, %s3, [#allocation8]
    $region25: #{tpu_custom_call.1} parent=1 // pred_fallthru
      _
    // Predicated region
    $region26: #{tpu_custom_call.1} parent=1 // pred_check
      _
    $region27: #{tpu_custom_call.1} parent=1 // pred_check_branch
      %178 = sbr.rel (0) target = $region29
    $region28: #{tpu_custom_call.1} parent=1 // pred_region
      %179 = dma.done [#allocation6], 128
    $region29: #{tpu_custom_call.1} parent=1 // pred_fallthru
      _
    // Predicated region
    $region30: #{tpu_custom_call.1} parent=1 // pred_check
      _
    $region31: #{tpu_custom_call.1} parent=1 // pred_check_branch
      %181 = sbr.rel (0) target = $region33
    $region32: #{tpu_custom_call.1} parent=1 // pred_region
      %182 = dma.done [#allocation8], 128
    $region33: #{tpu_custom_call.1} parent=1 // pred_fallthru
      _
    %183 = vsyncpa [#allocation6], 1
    %184 = vsyncpa [#allocation8], 1

</llo_original>
